<compile_context>
chip_gen: v6e
topology: v6e:2x2x1
jax: 0.10.0
libtpu: 0.0.40
codegen_flags: <defaults>
</compile_context>

<pallas_src>
import functools

import jax
import jax.numpy as jnp
from jax import lax
from jax.experimental import pallas as pl
from jax.experimental.pallas import tpu as pltpu

_LANE = 128
_SUBLANE = 8


def _round_up(a, b):
    return (a + b - 1) // b * b


def _chip_config():
    """Trace-time hardware query.

    Falls back to conservative v7x-like assumptions (64 MiB per-TC VMEM,
    2 TensorCores) if the query is unavailable.
    """
    vmem_cap = 64 * 1024 * 1024
    try:
        info = pltpu.get_tpu_info()
        vmem_cap = int(getattr(info, "vmem_capacity_bytes", vmem_cap))
    except Exception:
        pass
    small_vmem = vmem_cap <= 64 * 1024 * 1024  # v7x-like: 64 MiB / TC, 2 TCs
    return vmem_cap, small_vmem


def _adapter_kernel(x_ref, wd_ref, bd_ref, wu_ref, bu_ref, o_ref, *, approx_gelu):
    """One row-tile of the adapter forward pass.

    x_ref : (tm, Dp)   input token tile (f32 or bf16)
    wd_ref: (Dp, Hp)   down-projection weight (resident, single-buffered)
    bd_ref: (1, Hp)    down-projection bias
    wu_ref: (Hp, Dp)   up-projection weight (resident, single-buffered)
    bu_ref: (1, Dp)    up-projection bias
    o_ref : (tm, Dp)   output tile
    """
    # down_sampler: x @ W_down + b_down (MXU, f32 accumulation; no weight
    # upcast).  x is NOT kept live across the two matmuls -- it is re-read
    # from the resident VMEM input buffer for the residual at the end.
    h = jnp.dot(x_ref[...].astype(wd_ref.dtype), wd_ref[...],
                preferred_element_type=jnp.float32)
    h = h + bd_ref[...].astype(jnp.float32)

    if approx_gelu:
        # tanh-GELU: exp/tanh go to the EUP slot (free when VALU is binding).
        h = jax.nn.gelu(h, approximate=True)
    else:
        # exact erf-GELU for bit-parity with torch.nn.GELU() default.
        h = 0.5 * h * (1.0 + lax.erf(h * jnp.float32(0.7071067811865476)))

    # up_sampler: h @ W_up (cast only the small activation tile).
    y = jnp.dot(h.astype(wu_ref.dtype), wu_ref[...],
                preferred_element_type=jnp.float32)

    out_dtype = o_ref.dtype
    if out_dtype == jnp.float32:
        o_ref[...] = (y + bu_ref[...].astype(jnp.float32)
                      + x_ref[...].astype(jnp.float32))
    else:
        # Low-precision epilogue: one f32->out downcast pass, then bias +
        # residual in the output dtype (bf16 VALU on v6e/v7x) -> fewer VPU
        # passes over the (tm, Dp) tile.
        o_ref[...] = (y.astype(out_dtype) + bu_ref[...].astype(out_dtype)
                      + x_ref[...].astype(out_dtype))


def pad_adapter_params(w_down, b_down, w_up, b_up):
    """Pad call-invariant weights/biases to multiples of 128 ONCE (outside jit).

    Zero padding is an exact no-op through Linear -> GELU -> Linear.
    """
    D, H = w_down.shape
    Dp, Hp = _round_up(D, _LANE), _round_up(H, _LANE)
    w_down = jnp.pad(w_down, ((0, Dp - D), (0, Hp - H)))
    b_down = jnp.pad(b_down.reshape(-1), (0, Hp - H))
    w_up = jnp.pad(w_up, ((0, Hp - H), (0, Dp - D)))
    b_up = jnp.pad(b_up.reshape(-1), (0, Dp - D))
    return w_down, b_down, w_up, b_up


@functools.partial(jax.jit,
                   static_argnames=("tm", "vmem_limit_bytes", "approx_gelu"))
def basic_adapter(x, w_down, b_down, w_up, b_up, *,
                  tm=None,                 # None -> chip-aware (256 / 512)
                  vmem_limit_bytes=None,   # None -> chip-aware (48 / 96 MiB)
                  approx_gelu=False):
    """x: (B, S, D); w_down: (D, H) math layout; returns (B, S, D).

    bf16 inputs/weights are supported (recommended: halves the streamed HBM
    bytes and uses the native bf16 MXU); accumulation is always f32.
    Weights may be pre-padded with pad_adapter_params() to skip in-jit padding.
    """
    B, S, D = x.shape
    M = B * S
    D_w, H_w = w_down.shape
    Dp = _round_up(D_w, _LANE)
    Hp = _round_up(H_w, _LANE)

    # --- weight/bias lane padding (skipped entirely if pre-padded) ---------
    if (Dp, Hp) != (D_w, H_w):
        w_down = jnp.pad(w_down, ((0, Dp - D_w), (0, Hp - H_w)))
        w_up = jnp.pad(w_up, ((0, Hp - H_w), (0, Dp - D_w)))
    if b_down.size != Hp:
        b_down = jnp.pad(b_down.reshape(-1), (0, Hp - b_down.size))
    if b_up.size != Dp:
        b_up = jnp.pad(b_up.reshape(-1), (0, Dp - b_up.size))
    b_down2 = b_down.reshape(1, Hp)   # 2-D biases map cleanly onto vregs
    b_up2 = b_up.reshape(1, Dp)

    # --- activation lane padding only when D itself is ragged.  Rows are
    #     never padded: the last grid block is partial; its OOB writes are
    #     dropped (valid -- no cross-row reduction anywhere in the kernel).
    x2d = x.reshape(M, D)
    if Dp != D:
        x2d = jnp.pad(x2d, ((0, 0), (0, Dp - D)))

    # --- chip-aware tile / VMEM-limit selection -----------------------------
    vmem_cap, small_vmem = _chip_config()
    if tm is None:
        tm = 256 if small_vmem else 512          # sweep up to 1024 on v6e
    if vmem_limit_bytes is None:
        vmem_limit_bytes = (48 if small_vmem else 96) * 1024 * 1024
    # never request the whole physical VMEM; leave compiler scratch headroom
    vmem_limit_bytes = int(max(32 * 1024 * 1024,
                               min(vmem_limit_bytes, vmem_cap - 8 * 1024 * 1024)))

    m8 = _round_up(max(M, 1), _SUBLANE)
    tm_eff = max(_SUBLANE, min(_round_up(tm, _SUBLANE), m8))
    # Split a one-step grid across both TensorCores only on 2-TC (v7x-like)
    # chips; on single-TC v5e/v6e the extra grid step is pure overhead.
    if small_vmem and pl.cdiv(M, tm_eff) < 2 and tm_eff > _SUBLANE:
        tm_eff = max(_SUBLANE, _round_up(pl.cdiv(m8, 2), _SUBLANE))
    grid_m = pl.cdiv(M, tm_eff)

    resident = dict(pipeline_mode=pl.Buffered(1))   # grid-invariant operands
    # TODO(synk): on v5e (lowest HBM BW), sweep pipeline_mode=pl.Buffered(3)
    #             on the x in_spec if profiling shows exposed input DMA.

    kernel = functools.partial(_adapter_kernel, approx_gelu=approx_gelu)

    out2d = pl.pallas_call(
        kernel,
        out_shape=jax.ShapeDtypeStruct((M, Dp), x.dtype),
        grid_spec=pltpu.PrefetchScalarGridSpec(
            num_scalar_prefetch=0,
            grid=(grid_m,),
            in_specs=[
                pl.BlockSpec((tm_eff, Dp), lambda i: (i, 0)),            # x tile
                pl.BlockSpec((Dp, Hp), lambda i: (0, 0), **resident),    # W_down
                pl.BlockSpec((1, Hp), lambda i: (0, 0), **resident),     # b_down
                pl.BlockSpec((Hp, Dp), lambda i: (0, 0), **resident),    # W_up
                pl.BlockSpec((1, Dp), lambda i: (0, 0), **resident),     # b_up
            ],
            out_specs=pl.BlockSpec((tm_eff, Dp), lambda i: (i, 0)),
        ),
        compiler_params=pltpu.CompilerParams(
            dimension_semantics=("parallel",),
            vmem_limit_bytes=vmem_limit_bytes,
        ),
    )(x2d, w_down, b_down2, w_up, b_up2)

    if Dp != D:
        out2d = out2d[:, :D]
    return out2d.reshape(B, S, D)


def _init_params(key, input_dim, adapter_hidden_size):
    """Synthetic init mirroring nn.Linear parameter shapes ((in, out) layout)."""
    k1, k2, k3, k4 = jax.random.split(key, 4)
    scale_d = 1.0 / jnp.sqrt(input_dim)
    scale_u = 1.0 / jnp.sqrt(adapter_hidden_size)
    w_down = jax.random.uniform(k1, (input_dim, adapter_hidden_size),
                                jnp.float32, -scale_d, scale_d)
    b_down = jax.random.uniform(k2, (adapter_hidden_size,),
                                jnp.float32, -scale_d, scale_d)
    w_up = jax.random.uniform(k3, (adapter_hidden_size, input_dim),
                              jnp.float32, -scale_u, scale_u)
    b_up = jax.random.uniform(k4, (input_dim,),
                              jnp.float32, -scale_u, scale_u)
    return w_down, b_down, w_up, b_up


def _ref_fwd(x, wd, bd, wu, bu):
    h = jnp.dot(x, wd) + bd
    h = 0.5 * h * (1.0 + lax.erf(h / jnp.sqrt(2.0)))
    return jnp.dot(h, wu) + bu + x


if __name__ == "__main__":
    # Small shapes: batch=2, seq=8, input_dim=32, adapter_hidden_size=16
    B, S, D, H = 2, 8, 32, 16

    key = jax.random.PRNGKey(0)
    k_x, k_p = jax.random.split(key)
    x = jax.random.normal(k_x, (B, S, D), jnp.float32)
    w_down, b_down, w_up, b_up = _init_params(k_p, D, H)
    ref = _ref_fwd(x, w_down, b_down, w_up, b_up)

    # f32 path, unpadded params (padding traced inside jit).
    out = jax.block_until_ready(basic_adapter(x, w_down, b_down, w_up, b_up))
    assert out.shape == x.shape
    assert jnp.allclose(out, ref, atol=1e-5, rtol=1e-5), "f32 mismatch vs reference"

    # f32 path, weights pre-padded once outside jit (recommended for inference).
    padded = pad_adapter_params(w_down, b_down, w_up, b_up)
    out_pp = jax.block_until_ready(basic_adapter(x, *padded))
    assert jnp.allclose(out_pp, ref, atol=1e-5, rtol=1e-5), "pre-padded mismatch"

    # bf16-operand path (fast MXU + halved HBM traffic); accumulation stays f32.
    out_bf16 = jax.block_until_ready(basic_adapter(
        x.astype(jnp.bfloat16),
        w_down.astype(jnp.bfloat16), b_down.astype(jnp.bfloat16),
        w_up.astype(jnp.bfloat16), b_up.astype(jnp.bfloat16)))
    assert jnp.allclose(out_bf16.astype(jnp.float32), ref, atol=1e-1, rtol=1e-1), \
        "bf16 mismatch vs reference"

    # ragged token count (M not a multiple of the row tile / sublane) exercises
    # the partial-last-block path (no wrapper-side row padding / extra copy).
    x_odd = jax.random.normal(k_x, (2, 5, D), jnp.float32)
    out_odd = jax.block_until_ready(basic_adapter(x_odd, w_down, b_down, w_up, b_up))
    ref_odd = _ref_fwd(x_odd, w_down, b_down, w_up, b_up)
    assert jnp.allclose(out_odd, ref_odd, atol=1e-5, rtol=1e-5), "ragged mismatch"

    # tanh-GELU fast path (EUP); slight numeric deviation from exact erf.
    out_tanh = jax.block_until_ready(basic_adapter(
        x, w_down, b_down, w_up, b_up, approx_gelu=True))
    assert jnp.allclose(out_tanh, ref, atol=5e-2, rtol=5e-2), "tanh-GELU mismatch"

    print("KERNEL_OK")
</pallas_src>

<mosaic_0001>
module attributes {stable_mosaic.version = 11 : i64} {
  func.func @_adapter_kernel(%arg0: i32, %arg1: memref<8x128xf32, #tpu.memory_space<vmem>>, %arg2: memref<128x128xf32, #tpu.memory_space<vmem>>, %arg3: memref<1x128xf32, #tpu.memory_space<vmem>>, %arg4: memref<128x128xf32, #tpu.memory_space<vmem>>, %arg5: memref<1x128xf32, #tpu.memory_space<vmem>>, %arg6: memref<8x128xf32, #tpu.memory_space<vmem>>) attributes {dimension_semantics = [#tpu.dimension_semantics<parallel>], iteration_bounds = array<i64: 2>, scalar_prefetch = 0 : i64, scratch_operands = 0 : i64, tpu.core_type = #tpu.core_type<tc>, window_params = [{transform_indices = @transform_0, window_bounds = array<i64: 8, 128>}, {pipeline_mode = #tpu.pipeline_mode<synchronous>, transform_indices = @transform_1, window_bounds = array<i64: 128, 128>}, {pipeline_mode = #tpu.pipeline_mode<synchronous>, transform_indices = @transform_2, window_bounds = array<i64: 1, 128>}, {pipeline_mode = #tpu.pipeline_mode<synchronous>, transform_indices = @transform_3, window_bounds = array<i64: 128, 128>}, {pipeline_mode = #tpu.pipeline_mode<synchronous>, transform_indices = @transform_4, window_bounds = array<i64: 1, 128>}, {transform_indices = @transform_5, window_bounds = array<i64: 8, 128>}]} {
    %c0 = arith.constant 0 : index
    %c0_0 = arith.constant 0 : index
    %0 = vector.load %arg1[%c0, %c0_0] : memref<8x128xf32, #tpu.memory_space<vmem>>, vector<8x128xf32>
    %c0_1 = arith.constant 0 : index
    %c0_2 = arith.constant 0 : index
    %1 = vector.load %arg2[%c0_1, %c0_2] : memref<128x128xf32, #tpu.memory_space<vmem>>, vector<128x128xf32>
    %cst = arith.constant dense<0.000000e+00> : vector<8x128xf32>
    %2 = tpu.matmul %0, %1, %cst {dimension_numbers = #tpu.dot_dimension_numbers<[1], [0], [0], [1], [0, 0, 1, 1], [], []>} : vector<8x128xf32>, vector<128x128xf32>, vector<8x128xf32> -> vector<8x128xf32>
    %c0_3 = arith.constant 0 : index
    %c0_4 = arith.constant 0 : index
    %3 = vector.load %arg3[%c0_3, %c0_4] : memref<1x128xf32, #tpu.memory_space<vmem>>, vector<1x128xf32>
    %4 = vector.broadcast %3 : vector<1x128xf32> to vector<8x128xf32>
    %5 = arith.addf %2, %4 : vector<8x128xf32>
    %cst_5 = arith.constant 5.000000e-01 : f32
    %6 = vector.broadcast %cst_5 : f32 to vector<8x128xf32>
    %7 = arith.mulf %6, %5 : vector<8x128xf32>
    %cst_6 = arith.constant 0.707106769 : f32
    %8 = vector.broadcast %cst_6 : f32 to vector<8x128xf32>
    %9 = arith.mulf %5, %8 : vector<8x128xf32>
    %10 = math.erf %9 : vector<8x128xf32>
    %cst_7 = arith.constant 1.000000e+00 : f32
    %11 = vector.broadcast %cst_7 : f32 to vector<8x128xf32>
    %12 = arith.addf %11, %10 : vector<8x128xf32>
    %13 = arith.mulf %7, %12 : vector<8x128xf32>
    %c0_8 = arith.constant 0 : index
    %c0_9 = arith.constant 0 : index
    %14 = vector.load %arg4[%c0_8, %c0_9] : memref<128x128xf32, #tpu.memory_space<vmem>>, vector<128x128xf32>
    %cst_10 = arith.constant dense<0.000000e+00> : vector<8x128xf32>
    %15 = tpu.matmul %13, %14, %cst_10 {dimension_numbers = #tpu.dot_dimension_numbers<[1], [0], [0], [1], [0, 0, 1, 1], [], []>} : vector<8x128xf32>, vector<128x128xf32>, vector<8x128xf32> -> vector<8x128xf32>
    %c0_11 = arith.constant 0 : index
    %c0_12 = arith.constant 0 : index
    %16 = vector.load %arg5[%c0_11, %c0_12] : memref<1x128xf32, #tpu.memory_space<vmem>>, vector<1x128xf32>
    %17 = vector.broadcast %16 : vector<1x128xf32> to vector<8x128xf32>
    %18 = arith.addf %15, %17 : vector<8x128xf32>
    %c0_13 = arith.constant 0 : index
    %c0_14 = arith.constant 0 : index
    %19 = vector.load %arg1[%c0_13, %c0_14] : memref<8x128xf32, #tpu.memory_space<vmem>>, vector<8x128xf32>
    %20 = arith.addf %18, %19 : vector<8x128xf32>
    %c0_15 = arith.constant 0 : index
    %c0_16 = arith.constant 0 : index
    %21 = vector.load %arg6[%c0_15, %c0_16] : memref<8x128xf32, #tpu.memory_space<vmem>>, vector<8x128xf32>
    tpu.vector_store %arg6[%c0_15, %c0_16], %20 {strides = array<i32>} : memref<8x128xf32, #tpu.memory_space<vmem>>, vector<8x128xf32>,
    return
  }
  func.func @transform_0(%arg0: i32) -> (i32, i32) {
    %c0_i32 = arith.constant 0 : i32
    %c0_i32_0 = arith.constant 0 : i32
    return %arg0, %c0_i32 : i32, i32
  }
  func.func @transform_1(%arg0: i32) -> (i32, i32) {
    %c0_i32 = arith.constant 0 : i32
    %c0_i32_0 = arith.constant 0 : i32
    %c0_i32_1 = arith.constant 0 : i32
    return %c0_i32, %c0_i32_0 : i32, i32
  }
  func.func @transform_2(%arg0: i32) -> (i32, i32) {
    %c0_i32 = arith.constant 0 : i32
    %c0_i32_0 = arith.constant 0 : i32
    %c0_i32_1 = arith.constant 0 : i32
    return %c0_i32, %c0_i32_0 : i32, i32
  }
  func.func @transform_3(%arg0: i32) -> (i32, i32) {
    %c0_i32 = arith.constant 0 : i32
    %c0_i32_0 = arith.constant 0 : i32
    %c0_i32_1 = arith.constant 0 : i32
    return %c0_i32, %c0_i32_0 : i32, i32
  }
  func.func @transform_4(%arg0: i32) -> (i32, i32) {
    %c0_i32 = arith.constant 0 : i32
    %c0_i32_0 = arith.constant 0 : i32
    %c0_i32_1 = arith.constant 0 : i32
    return %c0_i32, %c0_i32_0 : i32, i32
  }
  func.func @transform_5(%arg0: i32) -> (i32, i32) {
    %c0_i32 = arith.constant 0 : i32
    %c0_i32_0 = arith.constant 0 : i32
    return %arg0, %c0_i32 : i32, i32
  }
}

</mosaic_0001>

<llo_original>
// kernel: basic_adapter.1
$region0: #{basic_adapter.1}
  #allocation0 [shape = 'u32[]', space=smem, size = 0x4, offset = 0x4, fixed_abs, tag = 'smem constant byte address 0x4 - core index']
  #allocation1 [shape = 'u32[144,128]{1,0:T(1,128)}', space=vmem, size = 0x12000, scoped, tag = 'internal scratch']
  %s0 = inlined_call_operand.vmem [shape: f32[16,128], index: 0, kind: input, shape index: {}]
  %s1 = inlined_call_operand.vmem [shape: f32[128,128], index: 1, kind: input, shape index: {}]
  %s2 = inlined_call_operand.vmem [shape: f32[1,128], index: 2, kind: input, shape index: {}]
  %s3 = inlined_call_operand.vmem [shape: f32[128,128], index: 3, kind: input, shape index: {}]
  %s4 = inlined_call_operand.vmem [shape: f32[1,128], index: 4, kind: input, shape index: {}]
  %s5 = inlined_call_operand.vmem [shape: f32[16,128], index: 5, kind: output, shape index: {}]
  %s6 = sld [smem:[#allocation0]]
  $region53: #{basic_adapter.1} parent=0
    _
  %s8 = ssub.s32 1, %s6
  %s9 = scalar_select 0, %s8, %s6
  loop: start=0, step=1, limit=4
  $region2: #{basic_adapter.1} parent=0 // loop_pre_header
    _
  $region3: #{basic_adapter.1} parent=0 // loop_header
    %s11 = sphi 0, %s15
    %p12 = scmp.ge.s32.totalorder %s11, 4
    %s21 = sphi 0, %s23
    %s24 = sphi 0, %s21
    %s25 = sphi 0, %s24
    %s41 = sphi 0, %s25
    %s45 = sphi 0, %s45
    %s47 = sphi 0, %s45
    %s48 = sphi 0, %s47
    %s62 = sphi 0, %s48
    %s66 = sphi 0, %s66
    %s68 = sphi 0, %s66
    %s69 = sphi 0, %s68
    %s83 = sphi 0, %s69
    %s87 = sphi 0, %s87
    %s89 = sphi 0, %s87
    %s90 = sphi 0, %s89
    %s104 = sphi 0, %s90
    %s108 = sphi 0, %s108
    %s110 = sphi 0, %s108
    %s111 = sphi 0, %s110
    %s125 = sphi 0, %s111
    %s131 = sphi 0, %s133
    %s134 = sphi 0, %s131
    %s135 = sphi 0, %s134
    %s151 = sphi 0, %s135
  $region4: #{basic_adapter.1} parent=0 // loop_header_branch
    %14 = sbr.rel (%p12) target = $region8
  $region5: #{basic_adapter.1} parent=0 // loop_body
    %s16 = ssub.s32 %s11, 1
    %s17 = ssub.s32 %s11, 2
    %s18 = sadd.s32 %s11, 1
    %s19 = ssub.s32 %s11, %s18
    %p20 = scmp.eq.s32.totalorder %s19, 0
    %s22 = sadd.s32 %s21, 1
    %s23 = scalar_select %p20, %s21, %s22
    %p26 = pneg %p20
    %p27 = scmp.eq.s32.totalorder %s11, 1
    %p28 = por %p26, %p27
    %p29 = scmp.ne.s32.totalorder %s21, %s24
    %p30 = scmp.eq.s32.totalorder %s11, 0
    %p31 = por %p29, %p30
    %p32 = scmp.ne.s32.totalorder %s21, %s24
    %p33 = scmp.eq.s32.totalorder %s16, 1
    %p34 = por %p32, %p33
    %p35 = scmp.ne.s32.totalorder %s24, %s25
    %p36 = scmp.eq.s32.totalorder %s16, 0
    %p37 = por %p35, %p36
    %p38 = scmp.ne.s32.totalorder %s24, %s25
    %p39 = scmp.eq.s32.totalorder %s17, 1
    %p40 = por %p38, %p39
    %p42 = scmp.ne.s32.totalorder %s25, %s41
    %p43 = scmp.eq.s32.totalorder %s17, 0
    %p44 = por %p42, %p43
    %s46 = sadd.s32 %s45, 1
    %p49 = scmp.eq.s32.totalorder %s11, 1
    %p50 = scmp.ne.s32.totalorder %s45, %s47
    %p51 = scmp.eq.s32.totalorder %s11, 0
    %p52 = por %p50, %p51
    %p53 = scmp.ne.s32.totalorder %s45, %s47
    %p54 = scmp.eq.s32.totalorder %s16, 1
    %p55 = por %p53, %p54
    %p56 = scmp.ne.s32.totalorder %s47, %s48
    %p57 = scmp.eq.s32.totalorder %s16, 0
    %p58 = por %p56, %p57
    %p59 = scmp.ne.s32.totalorder %s47, %s48
    %p60 = scmp.eq.s32.totalorder %s17, 1
    %p61 = por %p59, %p60
    %p63 = scmp.ne.s32.totalorder %s48, %s62
    %p64 = scmp.eq.s32.totalorder %s17, 0
    %p65 = por %p63, %p64
    %s67 = sadd.s32 %s66, 1
    %p70 = scmp.eq.s32.totalorder %s11, 1
    %p71 = scmp.ne.s32.totalorder %s66, %s68
    %p72 = scmp.eq.s32.totalorder %s11, 0
    %p73 = por %p71, %p72
    %p74 = scmp.ne.s32.totalorder %s66, %s68
    %p75 = scmp.eq.s32.totalorder %s16, 1
    %p76 = por %p74, %p75
    %p77 = scmp.ne.s32.totalorder %s68, %s69
    %p78 = scmp.eq.s32.totalorder %s16, 0
    %p79 = por %p77, %p78
    %p80 = scmp.ne.s32.totalorder %s68, %s69
    %p81 = scmp.eq.s32.totalorder %s17, 1
    %p82 = por %p80, %p81
    %p84 = scmp.ne.s32.totalorder %s69, %s83
    %p85 = scmp.eq.s32.totalorder %s17, 0
    %p86 = por %p84, %p85
    %s88 = sadd.s32 %s87, 1
    %p91 = scmp.eq.s32.totalorder %s11, 1
    %p92 = scmp.ne.s32.totalorder %s87, %s89
    %p93 = scmp.eq.s32.totalorder %s11, 0
    %p94 = por %p92, %p93
    %p95 = scmp.ne.s32.totalorder %s87, %s89
    %p96 = scmp.eq.s32.totalorder %s16, 1
    %p97 = por %p95, %p96
    %p98 = scmp.ne.s32.totalorder %s89, %s90
    %p99 = scmp.eq.s32.totalorder %s16, 0
    %p100 = por %p98, %p99
    %p101 = scmp.ne.s32.totalorder %s89, %s90
    %p102 = scmp.eq.s32.totalorder %s17, 1
    %p103 = por %p101, %p102
    %p105 = scmp.ne.s32.totalorder %s90, %s104
    %p106 = scmp.eq.s32.totalorder %s17, 0
    %p107 = por %p105, %p106
    %s109 = sadd.s32 %s108, 1
    %p112 = scmp.eq.s32.totalorder %s11, 1
    %p113 = scmp.ne.s32.totalorder %s108, %s110
    %p114 = scmp.eq.s32.totalorder %s11, 0
    %p115 = por %p113, %p114
    %p116 = scmp.ne.s32.totalorder %s108, %s110
    %p117 = scmp.eq.s32.totalorder %s16, 1
    %p118 = por %p116, %p117
    %p119 = scmp.ne.s32.totalorder %s110, %s111
    %p120 = scmp.eq.s32.totalorder %s16, 0
    %p121 = por %p119, %p120
    %p122 = scmp.ne.s32.totalorder %s110, %s111
    %p123 = scmp.eq.s32.totalorder %s17, 1
    %p124 = por %p122, %p123
    %p126 = scmp.ne.s32.totalorder %s111, %s125
    %p127 = scmp.eq.s32.totalorder %s17, 0
    %p128 = por %p126, %p127
    %s129 = ssub.s32 %s11, %s18
    %p130 = scmp.eq.s32.totalorder %s129, 0
    %s132 = sadd.s32 %s131, 1
    %s133 = scalar_select %p130, %s131, %s132
    %p136 = pneg %p130
    %p137 = scmp.eq.s32.totalorder %s11, 1
    %p138 = por %p136, %p137
    %p139 = scmp.ne.s32.totalorder %s131, %s134
    %p140 = scmp.eq.s32.totalorder %s11, 0
    %p141 = por %p139, %p140
    %p142 = scmp.ne.s32.totalorder %s131, %s134
    %p143 = scmp.eq.s32.totalorder %s16, 1
    %p144 = por %p142, %p143
    %p145 = scmp.ne.s32.totalorder %s134, %s135
    %p146 = scmp.eq.s32.totalorder %s16, 0
    %p147 = por %p145, %p146
    %p148 = scmp.ne.s32.totalorder %s134, %s135
    %p149 = scmp.eq.s32.totalorder %s17, 1
    %p150 = por %p148, %p149
    %p152 = scmp.ne.s32.totalorder %s135, %s151
    %p153 = scmp.eq.s32.totalorder %s17, 0
    %p154 = por %p152, %p153
    %p155 = scmp.le.s32.totalorder 1, %s11
    %p156 = scmp.lt.s32.totalorder %s11, 3
    %p157 = pnand %p155, %p156
    %p158 = pneg %p157
    // Predicated region
    $region9: #{basic_adapter.1} parent=5 // pred_check
      _
    $region10: #{basic_adapter.1} parent=5 // pred_check_branch
      %160 = sbr.rel (%p157) target = $region12
    $region11: #{basic_adapter.1} parent=5 // pred_region
      %s161 = ssub.s32 %s11, 1
      // Predicated region
      $region13: #{basic_adapter.1} parent=11 // pred_check
        %p162 = pneg %p58
      $region14: #{basic_adapter.1} parent=11 // pred_check_branch
        %164 = sbr.rel (%p162) target = $region16
      $region15: #{basic_adapter.1} parent=11 // pred_region
        _
      $region16: #{basic_adapter.1} parent=11 // pred_fallthru
        _
      // Predicated region
      $region17: #{basic_adapter.1} parent=11 // pred_check
        %p165 = pneg %p79
      $region18: #{basic_adapter.1} parent=11 // pred_check_branch
        %167 = sbr.rel (%p165) target = $region20
      $region19: #{basic_adapter.1} parent=11 // pred_region
        _
      $region20: #{basic_adapter.1} parent=11 // pred_fallthru
        _
      // Predicated region
      $region21: #{basic_adapter.1} parent=11 // pred_check
        %p168 = pneg %p100
      $region22: #{basic_adapter.1} parent=11 // pred_check_branch
        %170 = sbr.rel (%p168) target = $region24
      $region23: #{basic_adapter.1} parent=11 // pred_region
        _
      $region24: #{basic_adapter.1} parent=11 // pred_fallthru
        _
      // Predicated region
      $region25: #{basic_adapter.1} parent=11 // pred_check
        %p171 = pneg %p121
      $region26: #{basic_adapter.1} parent=11 // pred_check_branch
        %173 = sbr.rel (%p171) target = $region28
      $region27: #{basic_adapter.1} parent=11 // pred_region
        _
      $region28: #{basic_adapter.1} parent=11 // pred_fallthru
        _
    $region12: #{basic_adapter.1} parent=5 // pred_fallthru
      _
    %p174 = scmp.lt.s32.totalorder %s11, 2
    // Predicated region
    $region29: #{basic_adapter.1} parent=5 // pred_check
      %p175 = pneg %p174
    $region30: #{basic_adapter.1} parent=5 // pred_check_branch
      %177 = sbr.rel (%p175) target = $region32
    $region31: #{basic_adapter.1} parent=5 // pred_region
      // Predicated region
      $region33: #{basic_adapter.1} parent=31 // pred_check
        %p178 = pneg %p31
      $region34: #{basic_adapter.1} parent=31 // pred_check_branch
        %180 = sbr.rel (%p178) target = $region36
      $region35: #{basic_adapter.1} parent=31 // pred_region
        %p181 = scmp.lt.s32.totalorder %s11, 1
        %s182 = scalar_select %p181, %s11, 1
        %s183 = smul.addr %s182, 8
        %s184 = scalar_lea.vmem %s0, %s183
      $region36: #{basic_adapter.1} parent=31 // pred_fallthru
        _
    $region32: #{basic_adapter.1} parent=5 // pred_fallthru
      _
    %p185 = scmp.le.s32.totalorder 1, %s11
    %p186 = scmp.lt.s32.totalorder %s11, 3
    %p187 = pnand %p185, %p186
    %p188 = pneg %p187
    // Predicated region
    $region37: #{basic_adapter.1} parent=5 // pred_check
      _
    $region38: #{basic_adapter.1} parent=5 // pred_check_branch
      %190 = sbr.rel (%p187) target = $region40
    $region39: #{basic_adapter.1} parent=5 // pred_region
      %s191 = ssub.s32 %s11, 1
      %p192 = scmp.lt.s32.totalorder %s16, 1
      %s193 = scalar_select %p192, %s16, 1
      %s194 = smul.addr %s193, 8
      %s195 = scalar_lea.vmem %s0, %s194
      %p196 = pneg %p37
      %p197 = pneg %p34
      %p198 = pneg %p58
      %p199 = pneg %p55
      %p200 = pneg %p79
      %p201 = pneg %p76
      %p202 = pneg %p100
      %p203 = pneg %p97
      %p204 = pneg %p121
      %p205 = pneg %p118
      %p206 = pneg %p147
      %p207 = pneg %p144
      %p208 = scmp.lt.s32.totalorder %s16, 1
      %s209 = scalar_select %p208, %s16, 1
      %s210 = smul.addr %s209, 8
      %s211 = scalar_lea.vmem %s5, %s210
      %p212 = scmp.lt.s32.totalorder %s16, 1
      %s213 = scalar_select %p212, %s16, 1
      %s214 = smul.addr %s213, 8
      %s215 = scalar_lea.vmem %s0, %s214
      %p216 = scmp.lt.s32.totalorder %s16, 1
      %s217 = scalar_select %p216, %s16, 1
      %s218 = smul.addr %s217, 8
      %s219 = scalar_lea.vmem %s5, %s218
      %v220 = vld [vmem:[%s215] sm:$0xff]
      %v221 = vld [vmem:[%s1] sm:$0xff]
      %v222 = vld [vmem:[%s1 + $0x8] sm:$0xff]
      %v223 = vld [vmem:[%s1 + $0x10] sm:$0xff]
      %v224 = vld [vmem:[%s1 + $0x18] sm:$0xff]
      %v225 = vld [vmem:[%s1 + $0x20] sm:$0xff]
      %v226 = vld [vmem:[%s1 + $0x28] sm:$0xff]
      %v227 = vld [vmem:[%s1 + $0x30] sm:$0xff]
      %v228 = vld [vmem:[%s1 + $0x38] sm:$0xff]
      %v229 = vld [vmem:[%s1 + $0x40] sm:$0xff]
      %v230 = vld [vmem:[%s1 + $0x48] sm:$0xff]
      %v231 = vld [vmem:[%s1 + $0x50] sm:$0xff]
      %v232 = vld [vmem:[%s1 + $0x58] sm:$0xff]
      %v233 = vld [vmem:[%s1 + $0x60] sm:$0xff]
      %v234 = vld [vmem:[%s1 + $0x68] sm:$0xff]
      %v235 = vld [vmem:[%s1 + $0x70] sm:$0xff]
      %v236 = vld [vmem:[%s1 + $0x78] sm:$0xff]
      %v237 = vld [vmem:[%s2] sm:$0x1]
      %v239 = vlaneseq
      %v240 = vshrl.u32 %v239, 7
      %v241 = vsub.s32 0, %v240
      %v242 = vrot.slane %v237, %v241
      %244 = vmatprep.subr.mxu0 0.0
      %245 = vmatpush1.msra.mxu0 %v236
      %246 = vmatprep.subr.mxu0 0.0
      %247 = vmatpush1.msra.mxu0 %v235
      %248 = vmatprep.subr.mxu0 0.0
      %249 = vmatpush1.msra.mxu0 %v234
      %250 = vmatprep.subr.mxu0 0.0
      %251 = vmatpush1.msra.mxu0 %v233
      %252 = vmatprep.subr.mxu0 0.0
      %253 = vmatpush1.msra.mxu0 %v232
      %254 = vmatprep.subr.mxu0 0.0
      %255 = vmatpush1.msra.mxu0 %v231
      %256 = vmatprep.subr.mxu0 0.0
      %257 = vmatpush1.msra.mxu0 %v230
      %258 = vmatprep.subr.mxu0 0.0
      %259 = vmatpush1.msra.mxu0 %v229
      %260 = vmatprep.subr.mxu0 0.0
      %261 = vmatpush1.msra.mxu0 %v228
      %262 = vmatprep.subr.mxu0 0.0
      %263 = vmatpush1.msra.mxu0 %v227
      %264 = vmatprep.subr.mxu0 0.0
      %265 = vmatpush1.msra.mxu0 %v226
      %266 = vmatprep.subr.mxu0 0.0
      %267 = vmatpush1.msra.mxu0 %v225
      %268 = vmatprep.subr.mxu0 0.0
      %269 = vmatpush1.msra.mxu0 %v224
      %270 = vmatprep.subr.mxu0 0.0
      %271 = vmatpush1.msra.mxu0 %v223
      %272 = vmatprep.subr.mxu0 0.0
      %273 = vmatpush1.msra.mxu0 %v222
      %274 = vmatprep.subr.mxu0 0.0
      %275 = vmatpush1.msra.mxu0 %v221
      %276 = vmatprep.subr.mxu0 0.0
      %277 = vmatpush2.msra.mxu0 0.0
      %278 = vmatprep.subr.mxu0 0.0
      %279 = vmatpush2.msra.mxu0 0.0
      %280 = vmatprep.subr.mxu0 0.0
      %281 = vmatpush2.msra.mxu0 0.0
      %282 = vmatprep.subr.mxu0 0.0
      %283 = vmatpush2.msra.mxu0 0.0
      %284 = vmatprep.subr.mxu0 0.0
      %285 = vmatpush2.msra.mxu0 0.0
      %286 = vmatprep.subr.mxu0 0.0
      %287 = vmatpush2.msra.mxu0 0.0
      %288 = vmatprep.subr.mxu0 0.0
      %289 = vmatpush2.msra.mxu0 0.0
      %290 = vmatprep.subr.mxu0 0.0
      %291 = vmatpush2.msra.mxu0 0.0
      %292 = vmatprep.subr.mxu0 0.0
      %293 = vmatpush2.msra.mxu0 0.0
      %294 = vmatprep.subr.mxu0 0.0
      %295 = vmatpush2.msra.mxu0 0.0
      %296 = vmatprep.subr.mxu0 0.0
      %297 = vmatpush2.msra.mxu0 0.0
      %298 = vmatprep.subr.mxu0 0.0
      %299 = vmatpush2.msra.mxu0 0.0
      %300 = vmatprep.subr.mxu0 0.0
      %301 = vmatpush2.msra.mxu0 0.0
      %302 = vmatprep.subr.mxu0 0.0
      %303 = vmatpush2.msra.mxu0 0.0
      %304 = vmatprep.subr.mxu0 0.0
      %305 = vmatpush2.msra.mxu0 0.0
      %306 = vmatprep.subr.mxu0 0.0
      %307 = vmatpush2.msra.mxu0 0.0
      %308 = vmatprep.mubr.f32.mxu0 0.0
      %309 = vmatmul.mubr.f32.gmra.mxu0 %v220
      %v310 = vpop.f32.mrf.mxu0
      %v311 = vadd.f32 %v242, %v310
      %v312 = vpop.f32.mrf.mxu0
      %313 = vdwg.mxu0
      %v314 = vmul.f32 %v311, 0.5
      %v315 = vmul.f32 %v311, 0.70710677
      %v316 = verf.f32.pop %v315
      %v317 = vadd.f32 %v316, 1.0
      %v318 = vmul.f32 %v314, %v317
      %v319 = vld [vmem:[%s3] sm:$0xff]
      %v320 = vld [vmem:[%s3 + $0x8] sm:$0xff]
      %v321 = vld [vmem:[%s3 + $0x10] sm:$0xff]
      %v322 = vld [vmem:[%s3 + $0x18] sm:$0xff]
      %v323 = vld [vmem:[%s3 + $0x20] sm:$0xff]
      %v324 = vld [vmem:[%s3 + $0x28] sm:$0xff]
      %v325 = vld [vmem:[%s3 + $0x30] sm:$0xff]
      %v326 = vld [vmem:[%s3 + $0x38] sm:$0xff]
      %v327 = vld [vmem:[%s3 + $0x40] sm:$0xff]
      %v328 = vld [vmem:[%s3 + $0x48] sm:$0xff]
      %v329 = vld [vmem:[%s3 + $0x50] sm:$0xff]
      %v330 = vld [vmem:[%s3 + $0x58] sm:$0xff]
      %v331 = vld [vmem:[%s3 + $0x60] sm:$0xff]
      %v332 = vld [vmem:[%s3 + $0x68] sm:$0xff]
      %v333 = vld [vmem:[%s3 + $0x70] sm:$0xff]
      %v334 = vld [vmem:[%s3 + $0x78] sm:$0xff]
      %v335 = vld [vmem:[%s4] sm:$0x1]
      %v337 = vlaneseq
      %v338 = vshrl.u32 %v337, 7
      %v339 = vsub.s32 0, %v338
      %v340 = vrot.slane %v335, %v339
      %342 = vmatprep.subr.mxu0 0.0
      %343 = vmatpush1.msra.mxu0 %v334
      %344 = vmatprep.subr.mxu0 0.0
      %345 = vmatpush1.msra.mxu0 %v333
      %346 = vmatprep.subr.mxu0 0.0
      %347 = vmatpush1.msra.mxu0 %v332
      %348 = vmatprep.subr.mxu0 0.0
      %349 = vmatpush1.msra.mxu0 %v331
      %350 = vmatprep.subr.mxu0 0.0
      %351 = vmatpush1.msra.mxu0 %v330
      %352 = vmatprep.subr.mxu0 0.0
      %353 = vmatpush1.msra.mxu0 %v329
      %354 = vmatprep.subr.mxu0 0.0
      %355 = vmatpush1.msra.mxu0 %v328
      %356 = vmatprep.subr.mxu0 0.0
      %357 = vmatpush1.msra.mxu0 %v327
      %358 = vmatprep.subr.mxu0 0.0
      %359 = vmatpush1.msra.mxu0 %v326
      %360 = vmatprep.subr.mxu0 0.0
      %361 = vmatpush1.msra.mxu0 %v325
      %362 = vmatprep.subr.mxu0 0.0
      %363 = vmatpush1.msra.mxu0 %v324
      %364 = vmatprep.subr.mxu0 0.0
      %365 = vmatpush1.msra.mxu0 %v323
      %366 = vmatprep.subr.mxu0 0.0
      %367 = vmatpush1.msra.mxu0 %v322
      %368 = vmatprep.subr.mxu0 0.0
      %369 = vmatpush1.msra.mxu0 %v321
      %370 = vmatprep.subr.mxu0 0.0
      %371 = vmatpush1.msra.mxu0 %v320
      %372 = vmatprep.subr.mxu0 0.0
      %373 = vmatpush1.msra.mxu0 %v319
      %374 = vmatprep.subr.mxu0 0.0
      %375 = vmatpush2.msra.mxu0 0.0
      %376 = vmatprep.subr.mxu0 0.0
      %377 = vmatpush2.msra.mxu0 0.0
      %378 = vmatprep.subr.mxu0 0.0
      %379 = vmatpush2.msra.mxu0 0.0
      %380 = vmatprep.subr.mxu0 0.0
      %381 = vmatpush2.msra.mxu0 0.0
      %382 = vmatprep.subr.mxu0 0.0
      %383 = vmatpush2.msra.mxu0 0.0
      %384 = vmatprep.subr.mxu0 0.0
      %385 = vmatpush2.msra.mxu0 0.0
      %386 = vmatprep.subr.mxu0 0.0
      %387 = vmatpush2.msra.mxu0 0.0
      %388 = vmatprep.subr.mxu0 0.0
      %389 = vmatpush2.msra.mxu0 0.0
      %390 = vmatprep.subr.mxu0 0.0
      %391 = vmatpush2.msra.mxu0 0.0
      %392 = vmatprep.subr.mxu0 0.0
      %393 = vmatpush2.msra.mxu0 0.0
      %394 = vmatprep.subr.mxu0 0.0
      %395 = vmatpush2.msra.mxu0 0.0
      %396 = vmatprep.subr.mxu0 0.0
      %397 = vmatpush2.msra.mxu0 0.0
      %398 = vmatprep.subr.mxu0 0.0
      %399 = vmatpush2.msra.mxu0 0.0
      %400 = vmatprep.subr.mxu0 0.0
      %401 = vmatpush2.msra.mxu0 0.0
      %402 = vmatprep.subr.mxu0 0.0
      %403 = vmatpush2.msra.mxu0 0.0
      %404 = vmatprep.subr.mxu0 0.0
      %405 = vmatpush2.msra.mxu0 0.0
      %406 = vmatprep.mubr.f32.mxu0 0.0
      %407 = vmatmul.mubr.f32.gmra.mxu0 %v318
      %v408 = vpop.f32.mrf.mxu0
      %v409 = vadd.f32 %v340, %v408
      %v410 = vpop.f32.mrf.mxu0
      %411 = vdwg.mxu0
      %v412 = vadd.f32 %v409, %v220
      %413 = vst [vmem:[%s219] sm:$0xff] %v412
      %p414 = scmp.lt.s32.totalorder %s16, 1
      %s415 = scalar_select %p414, %s16, 1
      %s416 = smul.addr %s415, 8
      %s417 = scalar_lea.vmem %s5, %s416
      // Predicated region
      $region41: #{basic_adapter.1} parent=39 // pred_check
        %p418 = pneg %p144
      $region42: #{basic_adapter.1} parent=39 // pred_check_branch
        %420 = sbr.rel (%p418) target = $region44
      $region43: #{basic_adapter.1} parent=39 // pred_region
        _
      $region44: #{basic_adapter.1} parent=39 // pred_fallthru
        _
    $region40: #{basic_adapter.1} parent=5 // pred_fallthru
      _
    %p421 = scmp.le.s32.totalorder 2, %s11
    // Predicated region
    $region45: #{basic_adapter.1} parent=5 // pred_check
      %p422 = pneg %p421
    $region46: #{basic_adapter.1} parent=5 // pred_check_branch
      %424 = sbr.rel (%p422) target = $region48
    $region47: #{basic_adapter.1} parent=5 // pred_region
      %s425 = ssub.s32 %s11, 2
      // Predicated region
      $region49: #{basic_adapter.1} parent=47 // pred_check
        %p426 = pneg %p150
      $region50: #{basic_adapter.1} parent=47 // pred_check_branch
        %428 = sbr.rel (%p426) target = $region52
      $region51: #{basic_adapter.1} parent=47 // pred_region
        %p429 = scmp.lt.s32.totalorder %s17, 1
        %s430 = scalar_select %p429, %s17, 1
        %s431 = smul.addr %s430, 8
        %s432 = scalar_lea.vmem %s5, %s431
      $region52: #{basic_adapter.1} parent=47 // pred_fallthru
        _
    $region48: #{basic_adapter.1} parent=5 // pred_fallthru
      _
  $region6: #{basic_adapter.1} parent=0 // loop_footer
    %s15 = sadd.s32 1, %s11
  $region7: #{basic_adapter.1} parent=0 // loop_footer_branch
    %10 = sbr.rel target = $region3
  $region8: #{basic_adapter.1} parent=0 // loop_exit
    _

</llo_original>
